<compile_context>
chip_gen: v7x
topology: tpu7x:2x2x1
jax: 0.10.0
libtpu: 0.0.40
codegen_flags: <defaults>
</compile_context>

<pallas_src>
import functools

import jax
import jax.numpy as jnp
from jax.experimental import pallas as pl
from jax.experimental.pallas import tpu as pltpu

_LANE = 128


def _round_up(x, m):
    return (x + m - 1) // m * m


# ----------------------------------------------------------------------------
# Fused encoder -> VQ -> decoder kernel (one token tile per grid step)
# ----------------------------------------------------------------------------
def _vqae_fused_kernel(patches_ref, w_enc_ref, b_enc_ref, cb_ref, nhc2_ref,
                       cb_dec_ref, idx_ref, xhat_ref, loss_ref, *, n_valid):
    tile_n = patches_ref.shape[0]
    k_pad = cb_ref.shape[0]

    # ---- encoder: per-patch linear map (MXU, bf16 inputs / f32 accumulate).
    y = jnp.dot(patches_ref[...], w_enc_ref[...],
                preferred_element_type=jnp.float32) + b_enc_ref[...]     # (T, C) f32

    # ---- vector quantization: nearest codebook row.
    cb = cb_ref[...]                                                     # (K, C) f32 exact codes
    # y @ cb^T via dot_general (NT form, no materialized transpose).
    xc = jax.lax.dot_general(y.astype(jnp.bfloat16), cb.astype(jnp.bfloat16),
                             (((1,), (1,)), ((), ())),
                             preferred_element_type=jnp.float32)         # (T, K)
    # argmin |y - c|^2 == argmax (y.c - 0.5|c|^2); |y|^2 is row-constant.
    # Padded codebook lanes carry -1e30 inside nhc2 so they can never win.
    score = xc + nhc2_ref[...]                                           # (T, K) f32
    best = jnp.max(score, axis=-1, keepdims=True)                        # (T, 1)
    lane = jax.lax.broadcasted_iota(jnp.int32, (tile_n, k_pad), 1)
    # first index achieving the minimum distance (torch.argmin semantics)
    idx_col = jnp.min(jnp.where(score >= best, lane, k_pad), axis=-1,
                      keepdims=True)                                     # (T, 1)
    onehot = (lane == idx_col).astype(jnp.float32)                       # (T, K)

    # ---- lane-dense index row via exact one-hot matmul: idx[t] = sum_k k*oh[t,k]
    kvals = jax.lax.broadcasted_iota(jnp.int32, (1, k_pad), 1).astype(jnp.float32)
    idx_row = jax.lax.dot_general(kvals, onehot, (((1,), (1,)), ((), ())),
                                  preferred_element_type=jnp.float32)    # (1, T)
    idx_ref[...] = idx_row.astype(jnp.int32)[None]                       # (1, 1, T)

    # ---- commitment-loss partials: per-lane sums over this tile's valid rows.
    q = jnp.dot(onehot, cb, preferred_element_type=jnp.float32)          # (T, C) exact code rows
    row = pl.program_id(0) * tile_n + jax.lax.broadcasted_iota(
        jnp.int32, (tile_n, 1), 0)
    valid = (row < n_valid).astype(jnp.float32)                          # (T, 1)
    diff = q - y
    partial = jnp.sum(diff * diff * valid, axis=0, keepdims=True)        # (1, C)
    loss_ref[...] = partial[None, :, :]                                  # (1, 1, C)

    # ---- decoder folded into the gather: xhat = onehot @ (codebook@w_dec + b_dec)
    xhat_ref[...] = jnp.dot(onehot, cb_dec_ref[...],
                            preferred_element_type=jnp.float32)          # (T, din)


# ----------------------------------------------------------------------------
# NCHW <-> token-major patch plumbing (XLA glue)
# ----------------------------------------------------------------------------
def _patchify(x, p, dtype=jnp.bfloat16):
    # x: (B, C, H, W) -> (B*Hp*Wp, C*p*p), patch flattened as (C, ph, pw).
    # Cast fused with the transpose so only one bf16 patch array materializes.
    b, c, h, w = x.shape
    hp, wp = h // p, w // p
    x = x.astype(dtype).reshape(b, c, hp, p, wp, p)
    x = jnp.transpose(x, (0, 2, 4, 1, 3, 5))        # (B, Hp, Wp, C, p, p)
    return x.reshape(b * hp * wp, c * p * p), (b, hp, wp)


def _unpatchify(patches, meta, c_out, p):
    b, hp, wp = meta
    x = patches.reshape(b, hp, wp, c_out, p, p)
    x = jnp.transpose(x, (0, 3, 1, 4, 2, 5))        # (B, C, Hp, p, Wp, p)
    return x.reshape(b, c_out, hp * p, wp * p)


# ----------------------------------------------------------------------------
# VectorQuantizedAE forward (single fused pallas_call)
# ----------------------------------------------------------------------------
@functools.partial(jax.jit,
                   static_argnames=("patch", "commit_weight", "tile_n_max"))
def vq_ae_forward(x, params, *, patch=4, commit_weight=1.0, tile_n_max=2048):
    """Full forward: encode -> VQ -> decode.  x is NCHW float32."""
    b, c_in, h, w = x.shape
    p = patch
    hp, wp = h // p, w // p
    n = b * hp * wp
    din = c_in * p * p
    c_lat = params["w_enc"].shape[1]
    k = params["codebook"].shape[0]

    c_lat_p = _round_up(c_lat, _LANE)
    k_p = _round_up(k, _LANE)

    # Token tiling: rows per grid step are a multiple of 16 (bf16 sublane
    # packing); keep >= 2 grid steps whenever possible so the "parallel" axis
    # can shard across v7x's 2 TensorCores.  tile_n_max=2048 could be raised
    # to 4096 on v5e/v6e (128 MiB VMEM) if desired.
    tile_n = min(tile_n_max, _round_up(n, 16))
    if _round_up(n, tile_n) // tile_n < 2 and tile_n >= 32:
        tile_n = _round_up((n + 1) // 2, 16)
    n_pad = _round_up(n, tile_n)
    num_tiles = n_pad // tile_n

    # TODO(synk): patch extraction / reassembly remain XLA transposes; folding
    # them into the BlockSpec index_map would require NHWC inputs.
    patches, meta = _patchify(x, p)                                     # (n, din) bf16
    patches_p = jnp.pad(patches, ((0, n_pad - n), (0, 0)))              # row-pad only

    # Resident operands (feature dims padded to 128 lanes only where they feed
    # the MXU lane dim; HBM-side din stays unpadded).
    w_enc = jnp.pad(params["w_enc"],
                    ((0, 0), (0, c_lat_p - c_lat))).astype(jnp.bfloat16)   # (din, c_lat_p)
    b_enc = jnp.pad(params["b_enc"], ((0, 0), (0, c_lat_p - c_lat)))       # (1, c_lat_p)
    cb_f32 = params["codebook"].astype(jnp.float32)
    cb = jnp.pad(cb_f32, ((0, k_p - k), (0, c_lat_p - c_lat)))             # (k_p, c_lat_p)
    nhc2 = -0.5 * jnp.sum(jnp.square(cb_f32), axis=-1)
    nhc2 = jnp.pad(nhc2, (0, k_p - k), constant_values=-1e30)[None, :]     # (1, k_p)
    # Decoder folded into the codebook (exact: q is always a codebook row).
    cb_dec = cb_f32 @ params["w_dec"].astype(jnp.float32) + params["b_dec"]
    cb_dec = jnp.pad(cb_dec, ((0, k_p - k), (0, 0)))                       # (k_p, din)

    # VMEM budget: double-buffered tiled blocks + resident weights + live
    # (tile_n, 128)-ish f32 intermediates; clamp to [32, 48] MiB (v7x-safe).
    per_step_io = tile_n * din * 2 + tile_n * din * 4 + tile_n * 4 + c_lat_p * 4
    resident = (din * c_lat_p * 2 + c_lat_p * 4 + k_p * c_lat_p * 4
                + k_p * 4 + k_p * din * 4)
    live = 8 * tile_n * max(c_lat_p, k_p) * 4
    vmem_limit = int(min(max(2 * (2 * per_step_io + resident + live),
                             32 * 1024 * 1024), 48 * 1024 * 1024))

    flops = 2 * n_pad * (din * c_lat_p + 2 * c_lat_p * k_p + k_p * din)
    bytes_accessed = (n_pad * din * 2 + n_pad * din * 4 + n_pad * 4
                      + num_tiles * c_lat_p * 4 + resident)

    idx3, xhat_patches, loss_part = pl.pallas_call(
        functools.partial(_vqae_fused_kernel, n_valid=n),
        out_shape=(
            jax.ShapeDtypeStruct((num_tiles, 1, tile_n), jnp.int32),     # code indices (lane-dense)
            jax.ShapeDtypeStruct((n_pad, din), jnp.float32),             # decoded patches
            jax.ShapeDtypeStruct((num_tiles, 1, c_lat_p), jnp.float32),  # loss partials
        ),
        grid_spec=pltpu.PrefetchScalarGridSpec(
            num_scalar_prefetch=0,
            grid=(num_tiles,),
            in_specs=[
                pl.BlockSpec((tile_n, din), lambda i: (i, 0)),           # patches (tiled)
                pl.BlockSpec((din, c_lat_p), lambda i: (0, 0)),          # w_enc (resident)
                pl.BlockSpec((1, c_lat_p), lambda i: (0, 0)),            # b_enc
                pl.BlockSpec((k_p, c_lat_p), lambda i: (0, 0)),          # codebook (f32)
                pl.BlockSpec((1, k_p), lambda i: (0, 0)),                # -0.5|c|^2 + pad mask
                pl.BlockSpec((k_p, din), lambda i: (0, 0)),              # codebook @ w_dec + b_dec
            ],
            out_specs=(
                pl.BlockSpec((1, 1, tile_n), lambda i: (i, 0, 0)),
                pl.BlockSpec((tile_n, din), lambda i: (i, 0)),
                pl.BlockSpec((1, 1, c_lat_p), lambda i: (i, 0, 0)),
            ),
        ),
        compiler_params=pltpu.CompilerParams(
            dimension_semantics=("parallel",),       # v7x: shard tiles over 2 TCs
            vmem_limit_bytes=vmem_limit,
        ),
        cost_estimate=pl.CostEstimate(flops=flops, transcendentals=0,
                                      bytes_accessed=bytes_accessed),
    )(patches_p, w_enc, b_enc, cb, nhc2, cb_dec)

    # TODO(synk): code selection uses bf16 MXU inputs for the distance matmul;
    # near-tie codes may differ from the f32 PyTorch reference (gathered code
    # rows themselves stay exact f32).
    idx_flat = idx3.reshape(n_pad)[:n]                                   # (n,)
    y_q = cb_f32[idx_flat]                                               # (n, c_lat) exact codes
    y_img = jnp.transpose(y_q.reshape(b, hp * wp, c_lat),
                          (0, 2, 1)).reshape(b, c_lat, hp, wp)
    x_hat = _unpatchify(xhat_patches[:n], meta, c_in, p)
    loss_commit = (jnp.sum(loss_part) / float(n * c_lat)) * commit_weight

    return {
        "y": y_img,                                   # (B, C_lat, Hp, Wp)
        "y_indices": idx_flat.reshape(b, hp * wp),    # (B, Hp*Wp)
        "loss_commit": loss_commit,                   # scalar
        "x_hat": x_hat,                               # (B, C_in, H, W)
    }


def init_params(key, c_in=3, c_lat=32, codebook_size=64, patch=4):
    k1, k2, k3, k4 = jax.random.split(key, 4)
    din = c_in * patch * patch
    w_enc = 0.05 * jax.random.normal(k1, (din, c_lat), jnp.float32)
    b_enc = jnp.zeros((1, c_lat), jnp.float32)
    codebook = jax.random.normal(k2, (codebook_size, c_lat), jnp.float32)
    w_dec = 0.05 * jax.random.normal(k3, (c_lat, din), jnp.float32)
    # ConvTranspose bias is per output channel, broadcast over the p*p patch.
    b_dec_ch = 0.01 * jax.random.normal(k4, (c_in,), jnp.float32)
    b_dec = jnp.repeat(b_dec_ch, patch * patch)[None, :]
    return {
        "w_enc": w_enc, "b_enc": b_enc,
        "codebook": codebook,
        "w_dec": w_dec, "b_dec": b_dec,
    }


# TODO(synk): EMA codebook update (training-time buffers in VectorQuantize) is
# a parameter update, not part of the forward compute, and is not implemented.
# Only the commitment term of the VQ loss is emitted (EMA codebook -> no
# learnable-codebook loss term), matching the reference's default config.

if __name__ == "__main__":
    key = jax.random.PRNGKey(0)
    pkey, xkey = jax.random.split(key)

    B, C_IN, H, W = 2, 3, 16, 16
    C_LAT, K, P = 32, 64, 4

    params = init_params(pkey, c_in=C_IN, c_lat=C_LAT, codebook_size=K, patch=P)
    x = jax.random.normal(xkey, (B, C_IN, H, W), jnp.float32)

    out = vq_ae_forward(x, params, patch=P, commit_weight=1.0)
    jax.block_until_ready(out)

    assert out["x_hat"].shape == x.shape
    assert out["y"].shape == (B, C_LAT, H // P, W // P)
    assert out["y_indices"].shape == (B, (H // P) * (W // P))
    assert out["loss_commit"].shape == ()

    print("KERNEL_OK")
</pallas_src>

<mosaic_0001>
module attributes {stable_mosaic.version = 11 : i64} {
  func.func @_vqae_fused_kernel(%arg0: i32, %arg1: memref<16x48xbf16, #tpu.memory_space<vmem>>, %arg2: memref<48x128xbf16, #tpu.memory_space<vmem>>, %arg3: memref<1x128xf32, #tpu.memory_space<vmem>>, %arg4: memref<128x128xf32, #tpu.memory_space<vmem>>, %arg5: memref<1x128xf32, #tpu.memory_space<vmem>>, %arg6: memref<128x48xf32, #tpu.memory_space<vmem>>, %arg7: memref<1x1x16xi32, #tpu.memory_space<vmem>>, %arg8: memref<16x48xf32, #tpu.memory_space<vmem>>, %arg9: memref<1x1x128xf32, #tpu.memory_space<vmem>>) attributes {dimension_semantics = [#tpu.dimension_semantics<parallel>], iteration_bounds = array<i64: 2>, scalar_prefetch = 0 : i64, scratch_operands = 0 : i64, tpu.core_type = #tpu.core_type<tc>, window_params = [{transform_indices = @transform_0, window_bounds = array<i64: 16, 48>}, {pipeline_mode = #tpu.pipeline_mode<synchronous>, transform_indices = @transform_1, window_bounds = array<i64: 48, 128>}, {pipeline_mode = #tpu.pipeline_mode<synchronous>, transform_indices = @transform_2, window_bounds = array<i64: 1, 128>}, {pipeline_mode = #tpu.pipeline_mode<synchronous>, transform_indices = @transform_3, window_bounds = array<i64: 128, 128>}, {pipeline_mode = #tpu.pipeline_mode<synchronous>, transform_indices = @transform_4, window_bounds = array<i64: 1, 128>}, {pipeline_mode = #tpu.pipeline_mode<synchronous>, transform_indices = @transform_5, window_bounds = array<i64: 128, 48>}, {transform_indices = @transform_6, window_bounds = array<i64: 1, 1, 16>}, {transform_indices = @transform_7, window_bounds = array<i64: 16, 48>}, {transform_indices = @transform_8, window_bounds = array<i64: 1, 1, 128>}]} {
    %c0 = arith.constant 0 : index
    %c0_0 = arith.constant 0 : index
    %0 = vector.load %arg1[%c0, %c0_0] : memref<16x48xbf16, #tpu.memory_space<vmem>>, vector<16x48xbf16>
    %c0_1 = arith.constant 0 : index
    %c0_2 = arith.constant 0 : index
    %1 = vector.load %arg2[%c0_1, %c0_2] : memref<48x128xbf16, #tpu.memory_space<vmem>>, vector<48x128xbf16>
    %cst = arith.constant dense<0.000000e+00> : vector<16x128xf32>
    %2 = tpu.matmul %0, %1, %cst {dimension_numbers = #tpu.dot_dimension_numbers<[1], [0], [0], [1], [0, 0, 1, 1], [], []>} : vector<16x48xbf16>, vector<48x128xbf16>, vector<16x128xf32> -> vector<16x128xf32>
    %c0_3 = arith.constant 0 : index
    %c0_4 = arith.constant 0 : index
    %3 = vector.load %arg3[%c0_3, %c0_4] : memref<1x128xf32, #tpu.memory_space<vmem>>, vector<1x128xf32>
    %4 = vector.broadcast %3 : vector<1x128xf32> to vector<16x128xf32>
    %5 = arith.addf %2, %4 : vector<16x128xf32>
    %c0_5 = arith.constant 0 : index
    %c0_6 = arith.constant 0 : index
    %6 = vector.load %arg4[%c0_5, %c0_6] : memref<128x128xf32, #tpu.memory_space<vmem>>, vector<128x128xf32>
    %7 = arith.truncf %5 : vector<16x128xf32> to vector<16x128xbf16>
    %8 = arith.truncf %6 : vector<128x128xf32> to vector<128x128xbf16>
    %cst_7 = arith.constant dense<0.000000e+00> : vector<16x128xf32>
    %9 = tpu.matmul %7, %8, %cst_7 {dimension_numbers = #tpu.dot_dimension_numbers<[1], [1], [0], [0], [0, 0, 1, 0], [], []>} : vector<16x128xbf16>, vector<128x128xbf16>, vector<16x128xf32> -> vector<16x128xf32>
    %c0_8 = arith.constant 0 : index
    %c0_9 = arith.constant 0 : index
    %10 = vector.load %arg5[%c0_8, %c0_9] : memref<1x128xf32, #tpu.memory_space<vmem>>, vector<1x128xf32>
    %11 = vector.broadcast %10 : vector<1x128xf32> to vector<16x128xf32>
    %12 = arith.addf %9, %11 : vector<16x128xf32>
    %cst_10 = arith.constant dense<0xFF800000> : vector<16xf32>
    %13 = vector.multi_reduction <maximumf>, %12, %cst_10 [1] : vector<16x128xf32> to vector<16xf32>
    %14 = vector.shape_cast %13 : vector<16xf32> to vector<16x1xf32>
    %15 = tpu.iota {dimensions = array<i32: 1>} : vector<16x128xi32>
    %16 = vector.broadcast %14 : vector<16x1xf32> to vector<16x128xf32>
    %17 = arith.cmpf oge, %12, %16 : vector<16x128xf32>
    %c128_i32 = arith.constant 128 : i32
    %18 = vector.broadcast %c128_i32 : i32 to vector<16x128xi32>
    %19 = arith.select %17, %15, %18 : vector<16x128xi1>, vector<16x128xi32>
    %cst_11 = arith.constant dense<2147483647> : vector<16xi32>
    %20 = vector.multi_reduction <minsi>, %19, %cst_11 [1] : vector<16x128xi32> to vector<16xi32>
    %21 = vector.shape_cast %20 : vector<16xi32> to vector<16x1xi32>
    %22 = vector.broadcast %21 : vector<16x1xi32> to vector<16x128xi32>
    %23 = arith.cmpi eq, %15, %22 : vector<16x128xi32>
    %24 = arith.extui %23 : vector<16x128xi1> to vector<16x128xi32>
    %25 = arith.sitofp %24 : vector<16x128xi32> to vector<16x128xf32>
    %26 = tpu.iota {dimensions = array<i32: 1>} : vector<1x128xi32>
    %27 = arith.sitofp %26 : vector<1x128xi32> to vector<1x128xf32>
    %cst_12 = arith.constant dense<0.000000e+00> : vector<1x16xf32>
    %28 = tpu.matmul %27, %25, %cst_12 {dimension_numbers = #tpu.dot_dimension_numbers<[1], [1], [0], [0], [0, 0, 1, 0], [], []>} : vector<1x128xf32>, vector<16x128xf32>, vector<1x16xf32> -> vector<1x16xf32>
    %29 = arith.fptosi %28 : vector<1x16xf32> to vector<1x16xi32>
    %30 = vector.shape_cast %29 : vector<1x16xi32> to vector<1x1x16xi32>
    %c0_13 = arith.constant 0 : index
    %c0_14 = arith.constant 0 : index
    %c0_15 = arith.constant 0 : index
    %31 = vector.load %arg7[%c0_13, %c0_14, %c0_15] : memref<1x1x16xi32, #tpu.memory_space<vmem>>, vector<1x1x16xi32>
    tpu.vector_store %arg7[%c0_13, %c0_14, %c0_15], %30 {strides = array<i32>} : memref<1x1x16xi32, #tpu.memory_space<vmem>>, vector<1x1x16xi32>,
    %cst_16 = arith.constant dense<0.000000e+00> : vector<16x128xf32>
    %32 = tpu.matmul %25, %6, %cst_16 {dimension_numbers = #tpu.dot_dimension_numbers<[1], [0], [0], [1], [0, 0, 1, 1], [], []>} : vector<16x128xf32>, vector<128x128xf32>, vector<16x128xf32> -> vector<16x128xf32>
    %c16_i32 = arith.constant 16 : i32
    %33 = arith.muli %arg0, %c16_i32 : i32
    %34 = tpu.iota {dimensions = array<i32: 0>} : vector<16x1xi32>
    %35 = vector.broadcast %33 : i32 to vector<16x1xi32>
    %36 = arith.addi %35, %34 : vector<16x1xi32>
    %c32_i32 = arith.constant 32 : i32
    %37 = vector.broadcast %c32_i32 : i32 to vector<16x1xi32>
    %38 = arith.cmpi slt, %36, %37 : vector<16x1xi32>
    %39 = arith.extui %38 : vector<16x1xi1> to vector<16x1xi32>
    %40 = arith.sitofp %39 : vector<16x1xi32> to vector<16x1xf32>
    %41 = arith.subf %32, %5 : vector<16x128xf32>
    %42 = arith.mulf %41, %41 : vector<16x128xf32>
    %43 = vector.broadcast %40 : vector<16x1xf32> to vector<16x128xf32>
    %44 = arith.mulf %42, %43 : vector<16x128xf32>
    %cst_17 = arith.constant dense<0.000000e+00> : vector<128xf32>
    %45 = vector.multi_reduction <add>, %44, %cst_17 [0] : vector<16x128xf32> to vector<128xf32>
    %46 = vector.shape_cast %45 : vector<128xf32> to vector<1x128xf32>
    %47 = vector.shape_cast %46 : vector<1x128xf32> to vector<1x1x128xf32>
    %c0_18 = arith.constant 0 : index
    %c0_19 = arith.constant 0 : index
    %c0_20 = arith.constant 0 : index
    %48 = vector.load %arg9[%c0_18, %c0_19, %c0_20] : memref<1x1x128xf32, #tpu.memory_space<vmem>>, vector<1x1x128xf32>
    tpu.vector_store %arg9[%c0_18, %c0_19, %c0_20], %47 {strides = array<i32>} : memref<1x1x128xf32, #tpu.memory_space<vmem>>, vector<1x1x128xf32>,
    %c0_21 = arith.constant 0 : index
    %c0_22 = arith.constant 0 : index
    %49 = vector.load %arg6[%c0_21, %c0_22] : memref<128x48xf32, #tpu.memory_space<vmem>>, vector<128x48xf32>
    %cst_23 = arith.constant dense<0.000000e+00> : vector<16x48xf32>
    %50 = tpu.matmul %25, %49, %cst_23 {dimension_numbers = #tpu.dot_dimension_numbers<[1], [0], [0], [1], [0, 0, 1, 1], [], []>} : vector<16x128xf32>, vector<128x48xf32>, vector<16x48xf32> -> vector<16x48xf32>
    %c0_24 = arith.constant 0 : index
    %c0_25 = arith.constant 0 : index
    %51 = vector.load %arg8[%c0_24, %c0_25] : memref<16x48xf32, #tpu.memory_space<vmem>>, vector<16x48xf32>
    tpu.vector_store %arg8[%c0_24, %c0_25], %50 {strides = array<i32>} : memref<16x48xf32, #tpu.memory_space<vmem>>, vector<16x48xf32>,
    return
  }
  func.func @transform_0(%arg0: i32) -> (i32, i32) {
    %c0_i32 = arith.constant 0 : i32
    %c0_i32_0 = arith.constant 0 : i32
    return %arg0, %c0_i32 : i32, i32
  }
  func.func @transform_1(%arg0: i32) -> (i32, i32) {
    %c0_i32 = arith.constant 0 : i32
    %c0_i32_0 = arith.constant 0 : i32
    %c0_i32_1 = arith.constant 0 : i32
    return %c0_i32, %c0_i32_0 : i32, i32
  }
  func.func @transform_2(%arg0: i32) -> (i32, i32) {
    %c0_i32 = arith.constant 0 : i32
    %c0_i32_0 = arith.constant 0 : i32
    %c0_i32_1 = arith.constant 0 : i32
    return %c0_i32, %c0_i32_0 : i32, i32
  }
  func.func @transform_3(%arg0: i32) -> (i32, i32) {
    %c0_i32 = arith.constant 0 : i32
    %c0_i32_0 = arith.constant 0 : i32
    %c0_i32_1 = arith.constant 0 : i32
    return %c0_i32, %c0_i32_0 : i32, i32
  }
  func.func @transform_4(%arg0: i32) -> (i32, i32) {
    %c0_i32 = arith.constant 0 : i32
    %c0_i32_0 = arith.constant 0 : i32
    %c0_i32_1 = arith.constant 0 : i32
    return %c0_i32, %c0_i32_0 : i32, i32
  }
  func.func @transform_5(%arg0: i32) -> (i32, i32) {
    %c0_i32 = arith.constant 0 : i32
    %c0_i32_0 = arith.constant 0 : i32
    %c0_i32_1 = arith.constant 0 : i32
    return %c0_i32, %c0_i32_0 : i32, i32
  }
  func.func @transform_6(%arg0: i32) -> (i32, i32, i32) {
    %c0_i32 = arith.constant 0 : i32
    %c0_i32_0 = arith.constant 0 : i32
    %c0_i32_1 = arith.constant 0 : i32
    return %arg0, %c0_i32, %c0_i32_0 : i32, i32, i32
  }
  func.func @transform_7(%arg0: i32) -> (i32, i32) {
    %c0_i32 = arith.constant 0 : i32
    %c0_i32_0 = arith.constant 0 : i32
    return %arg0, %c0_i32 : i32, i32
  }
  func.func @transform_8(%arg0: i32) -> (i32, i32, i32) {
    %c0_i32 = arith.constant 0 : i32
    %c0_i32_0 = arith.constant 0 : i32
    %c0_i32_1 = arith.constant 0 : i32
    return %arg0, %c0_i32, %c0_i32_0 : i32, i32, i32
  }
}

</mosaic_0001>

<llo_original>
// kernel: vq_ae_forward.1
$region0: #{vq_ae_forward.1}
  #allocation0 [shape = 'u32[]', space=smem, size = 0x4, offset = 0x4, fixed_abs, tag = 'smem constant byte address 0x4 - core index']
  #allocation1 [shape = 'u32[144,128]{1,0:T(1,128)}', space=vmem, size = 0x12000, scoped, tag = 'internal scratch']
  %s0 = inlined_call_operand.vmem [shape: bf16[32,48], index: 0, kind: input, shape index: {}]
  %s1 = inlined_call_operand.vmem [shape: bf16[48,128], index: 1, kind: input, shape index: {}]
  %s2 = inlined_call_operand.vmem [shape: f32[1,128], index: 2, kind: input, shape index: {}]
  %s3 = inlined_call_operand.vmem [shape: f32[128,128], index: 3, kind: input, shape index: {}]
  %s4 = inlined_call_operand.vmem [shape: f32[1,128], index: 4, kind: input, shape index: {}]
  %s5 = inlined_call_operand.vmem [shape: f32[128,48], index: 5, kind: input, shape index: {}]
  %s6 = inlined_call_operand.vmem [shape: s32[2,1,16], index: 6, kind: output, shape index: {0}]
  %s7 = inlined_call_operand.vmem [shape: f32[32,48], index: 7, kind: output, shape index: {1}]
  %s8 = inlined_call_operand.vmem [shape: f32[2,1,128], index: 8, kind: output, shape index: {2}]
  %9 = xla_tuple %s6, %s7, %s8
  %s10 = sld [smem:[#allocation0]]
  $region73: #{vq_ae_forward.1} parent=0
    _
  %s12 = ssub.s32 1, %s10
  %s13 = scalar_select 0, %s12, %s10
  loop: start=0, step=1, limit=4
  $region2: #{vq_ae_forward.1} parent=0 // loop_pre_header
    _
  $region3: #{vq_ae_forward.1} parent=0 // loop_header
    %s15 = sphi 0, %s19
    %p16 = scmp.ge.s32.totalorder %s15, 4
    %s25 = sphi 0, %s27
    %s28 = sphi 0, %s25
    %s29 = sphi 0, %s28
    %s45 = sphi 0, %s29
    %s49 = sphi 0, %s49
    %s51 = sphi 0, %s49
    %s52 = sphi 0, %s51
    %s66 = sphi 0, %s52
    %s70 = sphi 0, %s70
    %s72 = sphi 0, %s70
    %s73 = sphi 0, %s72
    %s87 = sphi 0, %s73
    %s91 = sphi 0, %s91
    %s93 = sphi 0, %s91
    %s94 = sphi 0, %s93
    %s108 = sphi 0, %s94
    %s112 = sphi 0, %s112
    %s114 = sphi 0, %s112
    %s115 = sphi 0, %s114
    %s129 = sphi 0, %s115
    %s133 = sphi 0, %s133
    %s135 = sphi 0, %s133
    %s136 = sphi 0, %s135
    %s150 = sphi 0, %s136
    %s156 = sphi 0, %s158
    %s159 = sphi 0, %s156
    %s160 = sphi 0, %s159
    %s176 = sphi 0, %s160
    %s182 = sphi 0, %s184
    %s185 = sphi 0, %s182
    %s186 = sphi 0, %s185
    %s202 = sphi 0, %s186
    %s208 = sphi 0, %s210
    %s211 = sphi 0, %s208
    %s212 = sphi 0, %s211
    %s228 = sphi 0, %s212
  $region4: #{vq_ae_forward.1} parent=0 // loop_header_branch
    %18 = sbr.rel (%p16) target = $region8
  $region5: #{vq_ae_forward.1} parent=0 // loop_body
    %s20 = ssub.s32 %s15, 1
    %s21 = ssub.s32 %s15, 2
    %s22 = sadd.s32 %s15, 1
    %s23 = ssub.s32 %s15, %s22
    %p24 = scmp.eq.s32.totalorder %s23, 0
    %s26 = sadd.s32 %s25, 1
    %s27 = scalar_select %p24, %s25, %s26
    %p30 = pneg %p24
    %p31 = scmp.eq.s32.totalorder %s15, 1
    %p32 = por %p30, %p31
    %p33 = scmp.ne.s32.totalorder %s25, %s28
    %p34 = scmp.eq.s32.totalorder %s15, 0
    %p35 = por %p33, %p34
    %p36 = scmp.ne.s32.totalorder %s25, %s28
    %p37 = scmp.eq.s32.totalorder %s20, 1
    %p38 = por %p36, %p37
    %p39 = scmp.ne.s32.totalorder %s28, %s29
    %p40 = scmp.eq.s32.totalorder %s20, 0
    %p41 = por %p39, %p40
    %p42 = scmp.ne.s32.totalorder %s28, %s29
    %p43 = scmp.eq.s32.totalorder %s21, 1
    %p44 = por %p42, %p43
    %p46 = scmp.ne.s32.totalorder %s29, %s45
    %p47 = scmp.eq.s32.totalorder %s21, 0
    %p48 = por %p46, %p47
    %s50 = sadd.s32 %s49, 1
    %p53 = scmp.eq.s32.totalorder %s15, 1
    %p54 = scmp.ne.s32.totalorder %s49, %s51
    %p55 = scmp.eq.s32.totalorder %s15, 0
    %p56 = por %p54, %p55
    %p57 = scmp.ne.s32.totalorder %s49, %s51
    %p58 = scmp.eq.s32.totalorder %s20, 1
    %p59 = por %p57, %p58
    %p60 = scmp.ne.s32.totalorder %s51, %s52
    %p61 = scmp.eq.s32.totalorder %s20, 0
    %p62 = por %p60, %p61
    %p63 = scmp.ne.s32.totalorder %s51, %s52
    %p64 = scmp.eq.s32.totalorder %s21, 1
    %p65 = por %p63, %p64
    %p67 = scmp.ne.s32.totalorder %s52, %s66
    %p68 = scmp.eq.s32.totalorder %s21, 0
    %p69 = por %p67, %p68
    %s71 = sadd.s32 %s70, 1
    %p74 = scmp.eq.s32.totalorder %s15, 1
    %p75 = scmp.ne.s32.totalorder %s70, %s72
    %p76 = scmp.eq.s32.totalorder %s15, 0
    %p77 = por %p75, %p76
    %p78 = scmp.ne.s32.totalorder %s70, %s72
    %p79 = scmp.eq.s32.totalorder %s20, 1
    %p80 = por %p78, %p79
    %p81 = scmp.ne.s32.totalorder %s72, %s73
    %p82 = scmp.eq.s32.totalorder %s20, 0
    %p83 = por %p81, %p82
    %p84 = scmp.ne.s32.totalorder %s72, %s73
    %p85 = scmp.eq.s32.totalorder %s21, 1
    %p86 = por %p84, %p85
    %p88 = scmp.ne.s32.totalorder %s73, %s87
    %p89 = scmp.eq.s32.totalorder %s21, 0
    %p90 = por %p88, %p89
    %s92 = sadd.s32 %s91, 1
    %p95 = scmp.eq.s32.totalorder %s15, 1
    %p96 = scmp.ne.s32.totalorder %s91, %s93
    %p97 = scmp.eq.s32.totalorder %s15, 0
    %p98 = por %p96, %p97
    %p99 = scmp.ne.s32.totalorder %s91, %s93
    %p100 = scmp.eq.s32.totalorder %s20, 1
    %p101 = por %p99, %p100
    %p102 = scmp.ne.s32.totalorder %s93, %s94
    %p103 = scmp.eq.s32.totalorder %s20, 0
    %p104 = por %p102, %p103
    %p105 = scmp.ne.s32.totalorder %s93, %s94
    %p106 = scmp.eq.s32.totalorder %s21, 1
    %p107 = por %p105, %p106
    %p109 = scmp.ne.s32.totalorder %s94, %s108
    %p110 = scmp.eq.s32.totalorder %s21, 0
    %p111 = por %p109, %p110
    %s113 = sadd.s32 %s112, 1
    %p116 = scmp.eq.s32.totalorder %s15, 1
    %p117 = scmp.ne.s32.totalorder %s112, %s114
    %p118 = scmp.eq.s32.totalorder %s15, 0
    %p119 = por %p117, %p118
    %p120 = scmp.ne.s32.totalorder %s112, %s114
    %p121 = scmp.eq.s32.totalorder %s20, 1
    %p122 = por %p120, %p121
    %p123 = scmp.ne.s32.totalorder %s114, %s115
    %p124 = scmp.eq.s32.totalorder %s20, 0
    %p125 = por %p123, %p124
    %p126 = scmp.ne.s32.totalorder %s114, %s115
    %p127 = scmp.eq.s32.totalorder %s21, 1
    %p128 = por %p126, %p127
    %p130 = scmp.ne.s32.totalorder %s115, %s129
    %p131 = scmp.eq.s32.totalorder %s21, 0
    %p132 = por %p130, %p131
    %s134 = sadd.s32 %s133, 1
    %p137 = scmp.eq.s32.totalorder %s15, 1
    %p138 = scmp.ne.s32.totalorder %s133, %s135
    %p139 = scmp.eq.s32.totalorder %s15, 0
    %p140 = por %p138, %p139
    %p141 = scmp.ne.s32.totalorder %s133, %s135
    %p142 = scmp.eq.s32.totalorder %s20, 1
    %p143 = por %p141, %p142
    %p144 = scmp.ne.s32.totalorder %s135, %s136
    %p145 = scmp.eq.s32.totalorder %s20, 0
    %p146 = por %p144, %p145
    %p147 = scmp.ne.s32.totalorder %s135, %s136
    %p148 = scmp.eq.s32.totalorder %s21, 1
    %p149 = por %p147, %p148
    %p151 = scmp.ne.s32.totalorder %s136, %s150
    %p152 = scmp.eq.s32.totalorder %s21, 0
    %p153 = por %p151, %p152
    %s154 = ssub.s32 %s15, %s22
    %p155 = scmp.eq.s32.totalorder %s154, 0
    %s157 = sadd.s32 %s156, 1
    %s158 = scalar_select %p155, %s156, %s157
    %p161 = pneg %p155
    %p162 = scmp.eq.s32.totalorder %s15, 1
    %p163 = por %p161, %p162
    %p164 = scmp.ne.s32.totalorder %s156, %s159
    %p165 = scmp.eq.s32.totalorder %s15, 0
    %p166 = por %p164, %p165
    %p167 = scmp.ne.s32.totalorder %s156, %s159
    %p168 = scmp.eq.s32.totalorder %s20, 1
    %p169 = por %p167, %p168
    %p170 = scmp.ne.s32.totalorder %s159, %s160
    %p171 = scmp.eq.s32.totalorder %s20, 0
    %p172 = por %p170, %p171
    %p173 = scmp.ne.s32.totalorder %s159, %s160
    %p174 = scmp.eq.s32.totalorder %s21, 1
    %p175 = por %p173, %p174
    %p177 = scmp.ne.s32.totalorder %s160, %s176
    %p178 = scmp.eq.s32.totalorder %s21, 0
    %p179 = por %p177, %p178
    %s180 = ssub.s32 %s15, %s22
    %p181 = scmp.eq.s32.totalorder %s180, 0
    %s183 = sadd.s32 %s182, 1
    %s184 = scalar_select %p181, %s182, %s183
    %p187 = pneg %p181
    %p188 = scmp.eq.s32.totalorder %s15, 1
    %p189 = por %p187, %p188
    %p190 = scmp.ne.s32.totalorder %s182, %s185
    %p191 = scmp.eq.s32.totalorder %s15, 0
    %p192 = por %p190, %p191
    %p193 = scmp.ne.s32.totalorder %s182, %s185
    %p194 = scmp.eq.s32.totalorder %s20, 1
    %p195 = por %p193, %p194
    %p196 = scmp.ne.s32.totalorder %s185, %s186
    %p197 = scmp.eq.s32.totalorder %s20, 0
    %p198 = por %p196, %p197
    %p199 = scmp.ne.s32.totalorder %s185, %s186
    %p200 = scmp.eq.s32.totalorder %s21, 1
    %p201 = por %p199, %p200
    %p203 = scmp.ne.s32.totalorder %s186, %s202
    %p204 = scmp.eq.s32.totalorder %s21, 0
    %p205 = por %p203, %p204
    %s206 = ssub.s32 %s15, %s22
    %p207 = scmp.eq.s32.totalorder %s206, 0
    %s209 = sadd.s32 %s208, 1
    %s210 = scalar_select %p207, %s208, %s209
    %p213 = pneg %p207
    %p214 = scmp.eq.s32.totalorder %s15, 1
    %p215 = por %p213, %p214
    %p216 = scmp.ne.s32.totalorder %s208, %s211
    %p217 = scmp.eq.s32.totalorder %s15, 0
    %p218 = por %p216, %p217
    %p219 = scmp.ne.s32.totalorder %s208, %s211
    %p220 = scmp.eq.s32.totalorder %s20, 1
    %p221 = por %p219, %p220
    %p222 = scmp.ne.s32.totalorder %s211, %s212
    %p223 = scmp.eq.s32.totalorder %s20, 0
    %p224 = por %p222, %p223
    %p225 = scmp.ne.s32.totalorder %s211, %s212
    %p226 = scmp.eq.s32.totalorder %s21, 1
    %p227 = por %p225, %p226
    %p229 = scmp.ne.s32.totalorder %s212, %s228
    %p230 = scmp.eq.s32.totalorder %s21, 0
    %p231 = por %p229, %p230
    %p232 = scmp.le.s32.totalorder 1, %s15
    %p233 = scmp.lt.s32.totalorder %s15, 3
    %p234 = pnand %p232, %p233
    %p235 = pneg %p234
    // Predicated region
    $region9: #{vq_ae_forward.1} parent=5 // pred_check
      _
    $region10: #{vq_ae_forward.1} parent=5 // pred_check_branch
      %237 = sbr.rel (%p234) target = $region12
    $region11: #{vq_ae_forward.1} parent=5 // pred_region
      %s238 = ssub.s32 %s15, 1
      // Predicated region
      $region13: #{vq_ae_forward.1} parent=11 // pred_check
        %p239 = pneg %p62
      $region14: #{vq_ae_forward.1} parent=11 // pred_check_branch
        %241 = sbr.rel (%p239) target = $region16
      $region15: #{vq_ae_forward.1} parent=11 // pred_region
        _
      $region16: #{vq_ae_forward.1} parent=11 // pred_fallthru
        _
      // Predicated region
      $region17: #{vq_ae_forward.1} parent=11 // pred_check
        %p242 = pneg %p83
      $region18: #{vq_ae_forward.1} parent=11 // pred_check_branch
        %244 = sbr.rel (%p242) target = $region20
      $region19: #{vq_ae_forward.1} parent=11 // pred_region
        _
      $region20: #{vq_ae_forward.1} parent=11 // pred_fallthru
        _
      // Predicated region
      $region21: #{vq_ae_forward.1} parent=11 // pred_check
        %p245 = pneg %p104
      $region22: #{vq_ae_forward.1} parent=11 // pred_check_branch
        %247 = sbr.rel (%p245) target = $region24
      $region23: #{vq_ae_forward.1} parent=11 // pred_region
        _
      $region24: #{vq_ae_forward.1} parent=11 // pred_fallthru
        _
      // Predicated region
      $region25: #{vq_ae_forward.1} parent=11 // pred_check
        %p248 = pneg %p125
      $region26: #{vq_ae_forward.1} parent=11 // pred_check_branch
        %250 = sbr.rel (%p248) target = $region28
      $region27: #{vq_ae_forward.1} parent=11 // pred_region
        _
      $region28: #{vq_ae_forward.1} parent=11 // pred_fallthru
        _
      // Predicated region
      $region29: #{vq_ae_forward.1} parent=11 // pred_check
        %p251 = pneg %p146
      $region30: #{vq_ae_forward.1} parent=11 // pred_check_branch
        %253 = sbr.rel (%p251) target = $region32
      $region31: #{vq_ae_forward.1} parent=11 // pred_region
        _
      $region32: #{vq_ae_forward.1} parent=11 // pred_fallthru
        _
    $region12: #{vq_ae_forward.1} parent=5 // pred_fallthru
      _
    %p254 = scmp.lt.s32.totalorder %s15, 2
    // Predicated region
    $region33: #{vq_ae_forward.1} parent=5 // pred_check
      %p255 = pneg %p254
    $region34: #{vq_ae_forward.1} parent=5 // pred_check_branch
      %257 = sbr.rel (%p255) target = $region36
    $region35: #{vq_ae_forward.1} parent=5 // pred_region
      // Predicated region
      $region37: #{vq_ae_forward.1} parent=35 // pred_check
        %p258 = pneg %p35
      $region38: #{vq_ae_forward.1} parent=35 // pred_check_branch
        %260 = sbr.rel (%p258) target = $region40
      $region39: #{vq_ae_forward.1} parent=35 // pred_region
        %s261 = smul.u32 2, %s15
        %p262 = scmp.lt.s32.totalorder %s261, 3
        %s263 = scalar_select %p262, %s261, 3
        %s264 = smul.addr %s263, 4
        %s265 = scalar_lea.vmem %s0, %s264
        %s266 = smul.u32 2, %s15
      $region40: #{vq_ae_forward.1} parent=35 // pred_fallthru
        _
    $region36: #{vq_ae_forward.1} parent=5 // pred_fallthru
      _
    %p267 = scmp.le.s32.totalorder 1, %s15
    %p268 = scmp.lt.s32.totalorder %s15, 3
    %p269 = pnand %p267, %p268
    %p270 = pneg %p269
    // Predicated region
    $region41: #{vq_ae_forward.1} parent=5 // pred_check
      _
    $region42: #{vq_ae_forward.1} parent=5 // pred_check_branch
      %272 = sbr.rel (%p269) target = $region44
    $region43: #{vq_ae_forward.1} parent=5 // pred_region
      %s273 = ssub.s32 %s15, 1
      %s274 = smul.u32 2, %s20
      %p275 = scmp.lt.s32.totalorder %s274, 3
      %s276 = scalar_select %p275, %s274, 3
      %s277 = smul.addr %s276, 4
      %s278 = scalar_lea.vmem %s0, %s277
      %p279 = pneg %p41
      %p280 = pneg %p38
      %p281 = pneg %p62
      %p282 = pneg %p59
      %p283 = pneg %p83
      %p284 = pneg %p80
      %p285 = pneg %p104
      %p286 = pneg %p101
      %p287 = pneg %p125
      %p288 = pneg %p122
      %p289 = pneg %p146
      %p290 = pneg %p143
      %p291 = pneg %p172
      %p292 = pneg %p169
      %p293 = scmp.lt.s32.totalorder %s20, 1
      %s294 = scalar_select %p293, %s20, 1
      %s295 = scalar_lea.vmem %s6, %s294
      %p296 = pneg %p198
      %p297 = pneg %p195
      %s298 = smul.u32 2, %s20
      %p299 = scmp.lt.s32.totalorder %s298, 3
      %s300 = scalar_select %p299, %s298, 3
      %s301 = smul.addr %s300, 8
      %s302 = scalar_lea.vmem %s7, %s301
      %p303 = pneg %p224
      %p304 = pneg %p221
      %p305 = scmp.lt.s32.totalorder %s20, 1
      %s306 = scalar_select %p305, %s20, 1
      %s307 = scalar_lea.vmem %s8, %s306
      %s308 = smul.u32 2, %s20
      %p309 = scmp.lt.s32.totalorder %s308, 3
      %s310 = scalar_select %p309, %s308, 3
      %s311 = smul.addr %s310, 4
      %s312 = scalar_lea.vmem %s0, %s311
      %s313 = smul.u32 2, %s20
      %p314 = scmp.lt.s32.totalorder %s20, 1
      %s315 = scalar_select %p314, %s20, 1
      %s316 = scalar_lea.vmem %s6, %s315
      %s317 = smul.u32 2, %s20
      %p318 = scmp.lt.s32.totalorder %s317, 3
      %s319 = scalar_select %p318, %s317, 3
      %s320 = smul.addr %s319, 8
      %s321 = scalar_lea.vmem %s7, %s320
      %s322 = smul.u32 2, %s20
      %p323 = scmp.lt.s32.totalorder %s20, 1
      %s324 = scalar_select %p323, %s20, 1
      %s325 = scalar_lea.vmem %s8, %s324
      %v327 = vld [vmem:[%s312] sm:$0xf]
      %v328 = vld [vmem:[%s312 + $0x4] sm:$0xf]
      %v329 = vld [vmem:[%s1] sm:$0xf]
      %v330 = vld [vmem:[%s1 + $0x4] sm:$0xf]
      %v331 = vld [vmem:[%s1 + $0x8] sm:$0xf]
      %v332 = vld [vmem:[%s1 + $0xc] sm:$0xf]
      %v333 = vld [vmem:[%s1 + $0x10] sm:$0xf]
      %v334 = vld [vmem:[%s1 + $0x14] sm:$0xf]
      %v335 = vld [vmem:[%s2] sm:$0x1]
      %v337 = vlaneseq
      %v338 = vshrl.u32 %v337, 7
      %v339 = vsub.s32 0, %v338
      %v340 = vrot.slane %v335, %v339
      %v344 = vunpack.c.l.b16 %v327
      %v345 = vunpack.c.l.b16 %v328
      %v346 = vpack.c.b16 %v345, %v344
      %v353 = vunpack.c.l.b16 %v329
      %v354 = vunpack.c.l.b16 %v330
      %v355 = vunpack.c.l.b16 %v331
      %v356 = vunpack.c.l.b16 %v332
      %v357 = vunpack.c.l.b16 %v333
      %v358 = vunpack.c.l.b16 %v334
      %v359 = vpack.c.b16 %v354, %v353
      %v360 = vpack.c.b16 %v356, %v355
      %v361 = vpack.c.b16 %v358, %v357
      %vm365 = vcmask 392192
      %v367 = vsel %vm365, %v346, 0
      %369 = vmatprep.subr.bf16.mxu0 0
      %370 = vmatpush1.bf16.msra.mxu0 %v359
      %371 = vmatprep.subr.bf16.mxu0 0
      %372 = vmatpush1.bf16.msra.mxu0 %v360
      %373 = vmatprep.subr.bf16.mxu0 0
      %374 = vmatpush1.bf16.msra.mxu0 %v361
      %375 = vmatprep.subr.bf16.mxu0 0
      %376 = vmatpush1.bf16.msra.mxu0 0
      %377 = vmatprep.subr.bf16.mxu0 0
      %378 = vmatpush1.bf16.msra.mxu0 0
      %379 = vmatprep.subr.bf16.mxu0 0
      %380 = vmatpush1.bf16.msra.mxu0 0
      %381 = vmatprep.subr.bf16.mxu0 0
      %382 = vmatpush1.bf16.msra.mxu0 0
      %383 = vmatprep.subr.bf16.mxu0 0
      %384 = vmatpush1.bf16.msra.mxu0 0
      %385 = vmatprep.subr.bf16.mxu0 0
      %386 = vmatpush1.bf16.msra.mxu0 0
      %387 = vmatprep.subr.bf16.mxu0 0
      %388 = vmatpush1.bf16.msra.mxu0 0
      %389 = vmatprep.subr.bf16.mxu0 0
      %390 = vmatpush1.bf16.msra.mxu0 0
      %391 = vmatprep.subr.bf16.mxu0 0
      %392 = vmatpush1.bf16.msra.mxu0 0
      %393 = vmatprep.subr.bf16.mxu0 0
      %394 = vmatpush1.bf16.msra.mxu0 0
      %395 = vmatprep.subr.bf16.mxu0 0
      %396 = vmatpush1.bf16.msra.mxu0 0
      %397 = vmatprep.subr.bf16.mxu0 0
      %398 = vmatpush1.bf16.msra.mxu0 0
      %399 = vmatprep.subr.bf16.mxu0 0
      %400 = vmatpush1.bf16.msra.mxu0 0
      %401 = vmatprep.mubr.bf16.mxu0 0
      %402 = vmatmul.mubr.bf16.gmra.mrb[0].mxu0 %v367
      %v403 = vpop.f32.mrb[0].mxu0
      %v404 = vadd.f32 %v340, %v403
      %v405 = vpop.f32.mrb[0].mxu0
      %v406 = vpop.f32.mrb[0].mxu0
      %v407 = vadd.f32 %v340, %v406
      %v408 = vpop.f32.mrb[0].mxu0
      %409 = vdwg.mxu0
      %v410 = vld [vmem:[%s3] sm:$0xff]
      %v411 = vld [vmem:[%s3 + $0x8] sm:$0xff]
      %v412 = vld [vmem:[%s3 + $0x10] sm:$0xff]
      %v413 = vld [vmem:[%s3 + $0x18] sm:$0xff]
      %v414 = vld [vmem:[%s3 + $0x20] sm:$0xff]
      %v415 = vld [vmem:[%s3 + $0x28] sm:$0xff]
      %v416 = vld [vmem:[%s3 + $0x30] sm:$0xff]
      %v417 = vld [vmem:[%s3 + $0x38] sm:$0xff]
      %v418 = vld [vmem:[%s3 + $0x40] sm:$0xff]
      %v419 = vld [vmem:[%s3 + $0x48] sm:$0xff]
      %v420 = vld [vmem:[%s3 + $0x50] sm:$0xff]
      %v421 = vld [vmem:[%s3 + $0x58] sm:$0xff]
      %v422 = vld [vmem:[%s3 + $0x60] sm:$0xff]
      %v423 = vld [vmem:[%s3 + $0x68] sm:$0xff]
      %v424 = vld [vmem:[%s3 + $0x70] sm:$0xff]
      %v425 = vld [vmem:[%s3 + $0x78] sm:$0xff]
      %v426 = vpack.c.bf16 %v407, %v404
      %v427 = vpack.c.bf16 %v411, %v410
      %v428 = vpack.c.bf16 %v413, %v412
      %v429 = vpack.c.bf16 %v415, %v414
      %v430 = vpack.c.bf16 %v417, %v416
      %v431 = vpack.c.bf16 %v419, %v418
      %v432 = vpack.c.bf16 %v421, %v420
      %v433 = vpack.c.bf16 %v423, %v422
      %v434 = vpack.c.bf16 %v425, %v424
      %v435 = vld [vmem:[%s4] sm:$0x1]
      %v437 = vlaneseq
      %v438 = vshrl.u32 %v437, 7
      %v439 = vsub.s32 0, %v438
      %v440 = vrot.slane %v435, %v439
      %442 = vmatprep.subr.bf16.mxu0 0
      %443 = vmatpush1.bf16.xpose.msra.mxu0 %v427
      %444 = vmatprep.subr.bf16.mxu0 0
      %445 = vmatpush1.bf16.xpose.msra.mxu0 %v428
      %446 = vmatprep.subr.bf16.mxu0 0
      %447 = vmatpush1.bf16.xpose.msra.mxu0 %v429
      %448 = vmatprep.subr.bf16.mxu0 0
      %449 = vmatpush1.bf16.xpose.msra.mxu0 %v430
      %450 = vmatprep.subr.bf16.mxu0 0
      %451 = vmatpush1.bf16.xpose.msra.mxu0 %v431
      %452 = vmatprep.subr.bf16.mxu0 0
      %453 = vmatpush1.bf16.xpose.msra.mxu0 %v432
      %454 = vmatprep.subr.bf16.mxu0 0
      %455 = vmatpush1.bf16.xpose.msra.mxu0 %v433
      %456 = vmatprep.subr.bf16.mxu0 0
      %457 = vmatpush1.bf16.xpose.msra.mxu0 %v434
      %458 = vmatprep.subr.bf16.mxu0 0
      %459 = vmatpush1.bf16.xpose.msra.mxu0 0
      %460 = vmatprep.subr.bf16.mxu0 0
      %461 = vmatpush1.bf16.xpose.msra.mxu0 0
      %462 = vmatprep.subr.bf16.mxu0 0
      %463 = vmatpush1.bf16.xpose.msra.mxu0 0
      %464 = vmatprep.subr.bf16.mxu0 0
      %465 = vmatpush1.bf16.xpose.msra.mxu0 0
      %466 = vmatprep.subr.bf16.mxu0 0
      %467 = vmatpush1.bf16.xpose.msra.mxu0 0
      %468 = vmatprep.subr.bf16.mxu0 0
      %469 = vmatpush1.bf16.xpose.msra.mxu0 0
      %470 = vmatprep.subr.bf16.mxu0 0
      %471 = vmatpush1.bf16.xpose.msra.mxu0 0
      %472 = vmatprep.subr.bf16.mxu0 0
      %473 = vmatpush1.bf16.xpose.msra.mxu0 0
      %474 = vmatprep.mubr.bf16.mxu0 0
      %475 = vmatmul.mubr.bf16.gmra.mrb[0].mxu0 %v426
      %v476 = vpop.f32.mrb[0].mxu0
      %v477 = vadd.f32 %v440, %v476
      %v478 = vpop.f32.mrb[0].mxu0
      %v479 = vpop.f32.mrb[0].mxu0
      %v480 = vadd.f32 %v440, %v479
      %v481 = vpop.f32.mrb[0].mxu0
      %482 = vdwg.mxu0
      %483 = vmax.xlane.f32.xlu0 %v477
      %v484 = vpop.xlane.xlu0 %483
      %485 = vmax.xlane.f32.xlu0 %v480
      %v486 = vpop.xlane.xlu0 %485
      %v487 = vlaneseq
      %v488 = vand.u32 %v487, 127
      %vm489 = vcmp.ge.f32.partialorder %v477, %v484
      %vm490 = vcmp.ge.f32.partialorder %v480, %v486
      %v491 = vsel %vm489, %v488, 128
      %v492 = vsel %vm490, %v488, 128
      %v493 = vand.u32 %v491, 65535
      %v494 = vshra.s32 %v491, 16
      %v495 = vcvt.s32.f32 %v493
      %v496 = vcvt.s32.f32 %v494
      %497 = vmin.xlane.f32.xlu0 %v496
      %v498 = vpop.xlane.xlu0 %497
      %vm499 = vcmp.eq.f32.partialorder %v496, %v498
      %v500 = vsel %vm499, %v495, inf
      %501 = vmin.xlane.f32.xlu0 %v500
      %v502 = vpop.xlane.xlu0 %501
      %v503 = vcvt.f32.s32 %v502
      %v504 = vcvt.f32.s32 %v498
      %v505 = vshll.u32 %v504, 16
      %v506 = vadd.s32 %v505, %v503
      %v507 = vand.u32 %v492, 65535
      %v508 = vshra.s32 %v492, 16
      %v509 = vcvt.s32.f32 %v507
      %v510 = vcvt.s32.f32 %v508
      %511 = vmin.xlane.f32.xlu0 %v510
      %v512 = vpop.xlane.xlu0 %511
      %vm513 = vcmp.eq.f32.partialorder %v510, %v512
      %v514 = vsel %vm513, %v509, inf
      %515 = vmin.xlane.f32.xlu0 %v514
      %v516 = vpop.xlane.xlu0 %515
      %v517 = vcvt.f32.s32 %v516
      %v518 = vcvt.f32.s32 %v512
      %v519 = vshll.u32 %v518, 16
      %v520 = vadd.s32 %v519, %v517
      %vm521 = vcmp.eq.s32.totalorder %v488, %v506
      %vm522 = vcmp.eq.s32.totalorder %v488, %v520
      %v523 = vsel %vm521, 1, 0
      %v524 = vsel %vm522, 1, 0
      %v525 = vcvt.s32.f32 %v523
      %v526 = vcvt.s32.f32 %v524
      %v527 = vcvt.s32.f32 %v488
      %528 = vmatprep.subr.mxu0 0.0
      %529 = vmatpush1.xpose.msra.mxu0 %v525
      %530 = vmatprep.subr.mxu0 0.0
      %531 = vmatpush1.xpose.msra.mxu0 %v526
      %532 = vmatprep.subr.mxu0 0.0
      %533 = vmatpush1.xpose.msra.mxu0 0.0
      %534 = vmatprep.subr.mxu0 0.0
      %535 = vmatpush1.xpose.msra.mxu0 0.0
      %536 = vmatprep.subr.mxu0 0.0
      %537 = vmatpush1.xpose.msra.mxu0 0.0
      %538 = vmatprep.subr.mxu0 0.0
      %539 = vmatpush1.xpose.msra.mxu0 0.0
      %540 = vmatprep.subr.mxu0 0.0
      %541 = vmatpush1.xpose.msra.mxu0 0.0
      %542 = vmatprep.subr.mxu0 0.0
      %543 = vmatpush1.xpose.msra.mxu0 0.0
      %544 = vmatprep.subr.mxu0 0.0
      %545 = vmatpush1.xpose.msra.mxu0 0.0
      %546 = vmatprep.subr.mxu0 0.0
      %547 = vmatpush1.xpose.msra.mxu0 0.0
      %548 = vmatprep.subr.mxu0 0.0
      %549 = vmatpush1.xpose.msra.mxu0 0.0
      %550 = vmatprep.subr.mxu0 0.0
      %551 = vmatpush1.xpose.msra.mxu0 0.0
      %552 = vmatprep.subr.mxu0 0.0
      %553 = vmatpush1.xpose.msra.mxu0 0.0
      %554 = vmatprep.subr.mxu0 0.0
      %555 = vmatpush1.xpose.msra.mxu0 0.0
      %556 = vmatprep.subr.mxu0 0.0
      %557 = vmatpush1.xpose.msra.mxu0 0.0
      %558 = vmatprep.subr.mxu0 0.0
      %559 = vmatpush1.xpose.msra.mxu0 0.0
      %560 = vmatprep.subr.mxu0 0.0
      %561 = vmatpush1.xpose.msra.mxu0 0.0
      %562 = vmatprep.subr.mxu0 0.0
      %563 = vmatpush1.xpose.msra.mxu0 0.0
      %564 = vmatprep.subr.mxu0 0.0
      %565 = vmatpush1.xpose.msra.mxu0 0.0
      %566 = vmatprep.subr.mxu0 0.0
      %567 = vmatpush1.xpose.msra.mxu0 0.0
      %568 = vmatprep.subr.mxu0 0.0
      %569 = vmatpush1.xpose.msra.mxu0 0.0
      %570 = vmatprep.subr.mxu0 0.0
      %571 = vmatpush1.xpose.msra.mxu0 0.0
      %572 = vmatprep.subr.mxu0 0.0
      %573 = vmatpush1.xpose.msra.mxu0 0.0
      %574 = vmatprep.subr.mxu0 0.0
      %575 = vmatpush1.xpose.msra.mxu0 0.0
      %576 = vmatprep.subr.mxu0 0.0
      %577 = vmatpush1.xpose.msra.mxu0 0.0
      %578 = vmatprep.subr.mxu0 0.0
      %579 = vmatpush1.xpose.msra.mxu0 0.0
      %580 = vmatprep.subr.mxu0 0.0
      %581 = vmatpush1.xpose.msra.mxu0 0.0
      %582 = vmatprep.subr.mxu0 0.0
      %583 = vmatpush1.xpose.msra.mxu0 0.0
      %584 = vmatprep.subr.mxu0 0.0
      %585 = vmatpush1.xpose.msra.mxu0 0.0
      %586 = vmatprep.subr.mxu0 0.0
      %587 = vmatpush1.xpose.msra.mxu0 0.0
      %588 = vmatprep.subr.mxu0 0.0
      %589 = vmatpush1.xpose.msra.mxu0 0.0
      %590 = vmatprep.subr.mxu0 0.0
      %591 = vmatpush1.xpose.msra.mxu0 0.0
      %592 = vmatprep.mubr.f32.mxu0 0.0
      %593 = vmatmul.mubr.f32.gmra.mrb[0].mxu0 %v527
      %v594 = vpop.f32.mrb[0].mxu0
      %v595 = vadd.f32 0.0, %v594
      %v596 = vpop.f32.mrb[0].mxu0
      %597 = vdwg.mxu0
      %v598 = vcvt.f32.s32.to.zero.pseudo %v595
      %vm599 = vcmask 122880
      %600 = vst.msk [vmem:[%s316] sm:$0x1] %vm599, %v598
      %601 = vmatprep.subr.mxu0 0.0
      %602 = vmatpush1.msra.mxu0 %v410
      %603 = vmatprep.subr.mxu0 0.0
      %604 = vmatpush1.msra.mxu0 %v411
      %605 = vmatprep.subr.mxu0 0.0
      %606 = vmatpush1.msra.mxu0 %v412
      %607 = vmatprep.subr.mxu0 0.0
      %608 = vmatpush1.msra.mxu0 %v413
      %609 = vmatprep.subr.mxu0 0.0
      %610 = vmatpush1.msra.mxu0 %v414
      %611 = vmatprep.subr.mxu0 0.0
      %612 = vmatpush1.msra.mxu0 %v415
      %613 = vmatprep.subr.mxu0 0.0
      %614 = vmatpush1.msra.mxu0 %v416
      %615 = vmatprep.subr.mxu0 0.0
      %616 = vmatpush1.msra.mxu0 %v417
      %617 = vmatprep.subr.mxu0 0.0
      %618 = vmatpush1.msra.mxu0 %v418
      %619 = vmatprep.subr.mxu0 0.0
      %620 = vmatpush1.msra.mxu0 %v419
      %621 = vmatprep.subr.mxu0 0.0
      %622 = vmatpush1.msra.mxu0 %v420
      %623 = vmatprep.subr.mxu0 0.0
      %624 = vmatpush1.msra.mxu0 %v421
      %625 = vmatprep.subr.mxu0 0.0
      %626 = vmatpush1.msra.mxu0 %v422
      %627 = vmatprep.subr.mxu0 0.0
      %628 = vmatpush1.msra.mxu0 %v423
      %629 = vmatprep.subr.mxu0 0.0
      %630 = vmatpush1.msra.mxu0 %v424
      %631 = vmatprep.subr.mxu0 0.0
      %632 = vmatpush1.msra.mxu0 %v425
      %633 = vmatprep.subr.mxu0 0.0
      %634 = vmatpush1.msra.mxu0 0.0
      %635 = vmatprep.subr.mxu0 0.0
      %636 = vmatpush1.msra.mxu0 0.0
      %637 = vmatprep.subr.mxu0 0.0
      %638 = vmatpush1.msra.mxu0 0.0
      %639 = vmatprep.subr.mxu0 0.0
      %640 = vmatpush1.msra.mxu0 0.0
      %641 = vmatprep.subr.mxu0 0.0
      %642 = vmatpush1.msra.mxu0 0.0
      %643 = vmatprep.subr.mxu0 0.0
      %644 = vmatpush1.msra.mxu0 0.0
      %645 = vmatprep.subr.mxu0 0.0
      %646 = vmatpush1.msra.mxu0 0.0
      %647 = vmatprep.subr.mxu0 0.0
      %648 = vmatpush1.msra.mxu0 0.0
      %649 = vmatprep.subr.mxu0 0.0
      %650 = vmatpush1.msra.mxu0 0.0
      %651 = vmatprep.subr.mxu0 0.0
      %652 = vmatpush1.msra.mxu0 0.0
      %653 = vmatprep.subr.mxu0 0.0
      %654 = vmatpush1.msra.mxu0 0.0
      %655 = vmatprep.subr.mxu0 0.0
      %656 = vmatpush1.msra.mxu0 0.0
      %657 = vmatprep.subr.mxu0 0.0
      %658 = vmatpush1.msra.mxu0 0.0
      %659 = vmatprep.subr.mxu0 0.0
      %660 = vmatpush1.msra.mxu0 0.0
      %661 = vmatprep.subr.mxu0 0.0
      %662 = vmatpush1.msra.mxu0 0.0
      %663 = vmatprep.subr.mxu0 0.0
      %664 = vmatpush1.msra.mxu0 0.0
      %665 = vmatprep.mubr.f32.mxu0 0.0
      %666 = vmatmul.mubr.f32.gmra.mrb[0].mxu0 %v525
      %v667 = vpop.f32.mrb[0].mxu0
      %v668 = vadd.f32 0.0, %v667
      %v669 = vpop.f32.mrb[0].mxu0
      %670 = vmatprep.mubr.f32.mxu0 0.0
      %671 = vmatmul.mubr.f32.gmra.mrb[0].mxu0 %v526
      %v672 = vpop.f32.mrb[0].mxu0
      %v673 = vadd.f32 0.0, %v672
      %v674 = vpop.f32.mrb[0].mxu0
      %675 = vdwg.mxu0
      %s676 = smul.u32 %s20, 16
      %v677 = vlaneseq
      %v678 = vshrl.u32 %v677, 7
      %v679 = vadd.s32 %v678, 8
      %v680 = vstv %s676
      %v681 = vadd.s32 %v680, %v678
      %v682 = vadd.s32 %v680, %v679
      %vm683 = vcmp.lt.s32.totalorder %v681, 32
      %vm684 = vcmp.lt.s32.totalorder %v682, 32
      %v685 = vsel %vm683, 1, 0
      %v686 = vsel %vm684, 1, 0
      %v687 = vcvt.s32.f32 %v685
      %v688 = vcvt.s32.f32 %v686
      %v689 = vsub.f32 %v668, %v404
      %v690 = vsub.f32 %v673, %v407
      %v691 = vmul.f32 %v689, %v689
      %v692 = vmul.f32 %v690, %v690
      %v693 = vmul.f32 %v691, %v687
      %v694 = vmul.f32 %v692, %v688
      %v695 = vadd.f32 %v693, %v694
      %v696 = vrot.slane %v695, 4
      %v697 = vadd.f32 %v695, %v696
      %v698 = vrot.slane %v697, 2
      %v699 = vadd.f32 %v697, %v698
      %v700 = vrot.slane %v699, 1
      %v701 = vadd.f32 %v699, %v700
      %702 = vst [vmem:[%s325] sm:$0x1] %v701
      %v703 = vld [vmem:[%s5] sm:$0xff]
      %v704 = vld [vmem:[%s5 + $0x8] sm:$0xff]
      %v705 = vld [vmem:[%s5 + $0x10] sm:$0xff]
      %v706 = vld [vmem:[%s5 + $0x18] sm:$0xff]
      %v707 = vld [vmem:[%s5 + $0x20] sm:$0xff]
      %v708 = vld [vmem:[%s5 + $0x28] sm:$0xff]
      %v709 = vld [vmem:[%s5 + $0x30] sm:$0xff]
      %v710 = vld [vmem:[%s5 + $0x38] sm:$0xff]
      %v711 = vld [vmem:[%s5 + $0x40] sm:$0xff]
      %v712 = vld [vmem:[%s5 + $0x48] sm:$0xff]
      %v713 = vld [vmem:[%s5 + $0x50] sm:$0xff]
      %v714 = vld [vmem:[%s5 + $0x58] sm:$0xff]
      %v715 = vld [vmem:[%s5 + $0x60] sm:$0xff]
      %v716 = vld [vmem:[%s5 + $0x68] sm:$0xff]
      %v717 = vld [vmem:[%s5 + $0x70] sm:$0xff]
      %v718 = vld [vmem:[%s5 + $0x78] sm:$0xff]
      %719 = vmatprep.subr.mxu0 0.0
      %720 = vmatpush1.msra.mxu0 %v703
      %721 = vmatprep.subr.mxu0 0.0
      %722 = vmatpush1.msra.mxu0 %v704
      %723 = vmatprep.subr.mxu0 0.0
      %724 = vmatpush1.msra.mxu0 %v705
      %725 = vmatprep.subr.mxu0 0.0
      %726 = vmatpush1.msra.mxu0 %v706
      %727 = vmatprep.subr.mxu0 0.0
      %728 = vmatpush1.msra.mxu0 %v707
      %729 = vmatprep.subr.mxu0 0.0
      %730 = vmatpush1.msra.mxu0 %v708
      %731 = vmatprep.subr.mxu0 0.0
      %732 = vmatpush1.msra.mxu0 %v709
      %733 = vmatprep.subr.mxu0 0.0
      %734 = vmatpush1.msra.mxu0 %v710
      %735 = vmatprep.subr.mxu0 0.0
      %736 = vmatpush1.msra.mxu0 %v711
      %737 = vmatprep.subr.mxu0 0.0
      %738 = vmatpush1.msra.mxu0 %v712
      %739 = vmatprep.subr.mxu0 0.0
      %740 = vmatpush1.msra.mxu0 %v713
      %741 = vmatprep.subr.mxu0 0.0
      %742 = vmatpush1.msra.mxu0 %v714
      %743 = vmatprep.subr.mxu0 0.0
      %744 = vmatpush1.msra.mxu0 %v715
      %745 = vmatprep.subr.mxu0 0.0
      %746 = vmatpush1.msra.mxu0 %v716
      %747 = vmatprep.subr.mxu0 0.0
      %748 = vmatpush1.msra.mxu0 %v717
      %749 = vmatprep.subr.mxu0 0.0
      %750 = vmatpush1.msra.mxu0 %v718
      %751 = vmatprep.subr.mxu0 0.0
      %752 = vmatpush1.msra.mxu0 0.0
      %753 = vmatprep.subr.mxu0 0.0
      %754 = vmatpush1.msra.mxu0 0.0
      %755 = vmatprep.subr.mxu0 0.0
      %756 = vmatpush1.msra.mxu0 0.0
      %757 = vmatprep.subr.mxu0 0.0
      %758 = vmatpush1.msra.mxu0 0.0
      %759 = vmatprep.subr.mxu0 0.0
      %760 = vmatpush1.msra.mxu0 0.0
      %761 = vmatprep.subr.mxu0 0.0
      %762 = vmatpush1.msra.mxu0 0.0
      %763 = vmatprep.subr.mxu0 0.0
      %764 = vmatpush1.msra.mxu0 0.0
      %765 = vmatprep.subr.mxu0 0.0
      %766 = vmatpush1.msra.mxu0 0.0
      %767 = vmatprep.subr.mxu0 0.0
      %768 = vmatpush1.msra.mxu0 0.0
      %769 = vmatprep.subr.mxu0 0.0
      %770 = vmatpush1.msra.mxu0 0.0
      %771 = vmatprep.subr.mxu0 0.0
      %772 = vmatpush1.msra.mxu0 0.0
      %773 = vmatprep.subr.mxu0 0.0
      %774 = vmatpush1.msra.mxu0 0.0
      %775 = vmatprep.subr.mxu0 0.0
      %776 = vmatpush1.msra.mxu0 0.0
      %777 = vmatprep.subr.mxu0 0.0
      %778 = vmatpush1.msra.mxu0 0.0
      %779 = vmatprep.subr.mxu0 0.0
      %780 = vmatpush1.msra.mxu0 0.0
      %781 = vmatprep.subr.mxu0 0.0
      %782 = vmatpush1.msra.mxu0 0.0
      %783 = vmatprep.mubr.f32.mxu0 0.0
      %784 = vmatmul.mubr.f32.gmra.mrb[0].mxu0 %v525
      %v785 = vpop.f32.mrb[0].mxu0
      %v786 = vadd.f32 0.0, %v785
      %v787 = vpop.f32.mrb[0].mxu0
      %788 = vmatprep.mubr.f32.mxu0 0.0
      %789 = vmatmul.mubr.f32.gmra.mrb[0].mxu0 %v526
      %v790 = vpop.f32.mrb[0].mxu0
      %v791 = vadd.f32 0.0, %v790
      %v792 = vpop.f32.mrb[0].mxu0
      %793 = vdwg.mxu0
      %794 = vst.msk [vmem:[%s321] sm:$0xff] %vm365, %v786
      %795 = vst.msk [vmem:[%s321 + $0x8] sm:$0xff] %vm365, %v791
      %p796 = scmp.lt.s32.totalorder %s20, 1
      %s797 = scalar_select %p796, %s20, 1
      %s798 = scalar_lea.vmem %s6, %s797
      %s799 = smul.u32 2, %s20
      %p800 = scmp.lt.s32.totalorder %s799, 3
      %s801 = scalar_select %p800, %s799, 3
      %s802 = smul.addr %s801, 8
      %s803 = scalar_lea.vmem %s7, %s802
      %p804 = scmp.lt.s32.totalorder %s20, 1
      %s805 = scalar_select %p804, %s20, 1
      %s806 = scalar_lea.vmem %s8, %s805
      // Predicated region
      $region45: #{vq_ae_forward.1} parent=43 // pred_check
        %p807 = pneg %p169
      $region46: #{vq_ae_forward.1} parent=43 // pred_check_branch
        %809 = sbr.rel (%p807) target = $region48
      $region47: #{vq_ae_forward.1} parent=43 // pred_region
        _
      $region48: #{vq_ae_forward.1} parent=43 // pred_fallthru
        _
      // Predicated region
      $region49: #{vq_ae_forward.1} parent=43 // pred_check
        %p810 = pneg %p195
      $region50: #{vq_ae_forward.1} parent=43 // pred_check_branch
        %812 = sbr.rel (%p810) target = $region52
      $region51: #{vq_ae_forward.1} parent=43 // pred_region
        %s813 = smul.u32 2, %s20
      $region52: #{vq_ae_forward.1} parent=43 // pred_fallthru
        _
      // Predicated region
      $region53: #{vq_ae_forward.1} parent=43 // pred_check
        %p814 = pneg %p221
      $region54: #{vq_ae_forward.1} parent=43 // pred_check_branch
        %816 = sbr.rel (%p814) target = $region56
      $region55: #{vq_ae_forward.1} parent=43 // pred_region
        _
      $region56: #{vq_ae_forward.1} parent=43 // pred_fallthru
        _
    $region44: #{vq_ae_forward.1} parent=5 // pred_fallthru
      _
    %p817 = scmp.le.s32.totalorder 2, %s15
    // Predicated region
    $region57: #{vq_ae_forward.1} parent=5 // pred_check
      %p818 = pneg %p817
    $region58: #{vq_ae_forward.1} parent=5 // pred_check_branch
      %820 = sbr.rel (%p818) target = $region60
    $region59: #{vq_ae_forward.1} parent=5 // pred_region
      %s821 = ssub.s32 %s15, 2
      // Predicated region
      $region61: #{vq_ae_forward.1} parent=59 // pred_check
        %p822 = pneg %p175
      $region62: #{vq_ae_forward.1} parent=59 // pred_check_branch
        %824 = sbr.rel (%p822) target = $region64
      $region63: #{vq_ae_forward.1} parent=59 // pred_region
        %p825 = scmp.lt.s32.totalorder %s21, 1
        %s826 = scalar_select %p825, %s21, 1
        %s827 = scalar_lea.vmem %s6, %s826
      $region64: #{vq_ae_forward.1} parent=59 // pred_fallthru
        _
      // Predicated region
      $region65: #{vq_ae_forward.1} parent=59 // pred_check
        %p828 = pneg %p201
      $region66: #{vq_ae_forward.1} parent=59 // pred_check_branch
        %830 = sbr.rel (%p828) target = $region68
      $region67: #{vq_ae_forward.1} parent=59 // pred_region
        %s831 = smul.u32 2, %s21
        %p832 = scmp.lt.s32.totalorder %s831, 3
        %s833 = scalar_select %p832, %s831, 3
        %s834 = smul.addr %s833, 8
        %s835 = scalar_lea.vmem %s7, %s834
      $region68: #{vq_ae_forward.1} parent=59 // pred_fallthru
        _
      // Predicated region
      $region69: #{vq_ae_forward.1} parent=59 // pred_check
        %p836 = pneg %p227
      $region70: #{vq_ae_forward.1} parent=59 // pred_check_branch
        %838 = sbr.rel (%p836) target = $region72
      $region71: #{vq_ae_forward.1} parent=59 // pred_region
        %p839 = scmp.lt.s32.totalorder %s21, 1
        %s840 = scalar_select %p839, %s21, 1
        %s841 = scalar_lea.vmem %s8, %s840
      $region72: #{vq_ae_forward.1} parent=59 // pred_fallthru
        _
    $region60: #{vq_ae_forward.1} parent=5 // pred_fallthru
      _
  $region6: #{vq_ae_forward.1} parent=0 // loop_footer
    %s19 = sadd.s32 1, %s15
  $region7: #{vq_ae_forward.1} parent=0 // loop_footer_branch
    %14 = sbr.rel target = $region3
  $region8: #{vq_ae_forward.1} parent=0 // loop_exit
    _

</llo_original>
